<compile_context>
chip_gen: v5e
topology: v5e:2x2
jax: 0.10.0
libtpu: 0.0.40
codegen_flags: <defaults>
</compile_context>

<pallas_src>
import functools

import jax
import jax.numpy as jnp
import numpy as np
from jax.experimental import pallas as pl
from jax.experimental.pallas import tpu as pltpu


def _round_up(v, m):
    return ((v + m - 1) // m) * m


def _lr_kernel(mel_len_ref, excl_ref, dur_ref, x_ref, out_ref, *, t_chunk):
    # mel_len_ref: (B,) int32 in SMEM (scalar prefetch)
    # excl_ref / dur_ref: (1, 1, T_pad) int32 ; x_ref: (1, T_pad, H_pad)
    # out_ref: (1, TILE_L, H_pad)
    tile_l = out_ref.shape[1]
    t_pad = x_ref.shape[1]
    h_pad = x_ref.shape[2]
    n_chunks = t_pad // t_chunk

    b = pl.program_id(1)
    # Global length-tile index: leading axis is the megacore split of the
    # length-tile axis (size 1 or 2), inner axis iterates tiles per split.
    l_global = pl.program_id(0) * pl.num_programs(2) + pl.program_id(2)
    t0 = l_global * tile_l

    # Tile-skip: tiles entirely past this utterance's expanded length are pure
    # zero padding -> skip the VPU mask build and the MXU pass entirely.
    active = t0 < mel_len_ref[b]

    @pl.when(active)
    def _():
        # Output-frame index for the rows of this tile (shared by all chunks).
        t_idx = t0 + jax.lax.broadcasted_iota(jnp.int32, (tile_l, t_chunk), 0)
        acc = None
        for c in range(n_chunks):  # static unroll; n_chunks == 1 for typical T
            o = c * t_chunk
            excl = excl_ref[0, :, o:o + t_chunk]          # (1, t_chunk) int32
            dur = dur_ref[0, :, o:o + t_chunk]            # (1, t_chunk) int32
            # One-hot selection W[t, i] = (excl[i] <= t < excl[i] + dur[i]),
            # collapsed into a single unsigned range compare.  Built directly
            # in the activation dtype: 0/1 is exact in bf16, so no precision
            # is lost and no f32 upcast of x is needed.
            w = ((t_idx - excl).astype(jnp.uint32)
                 < dur.astype(jnp.uint32)).astype(x_ref.dtype)
            p = jnp.dot(w, x_ref[0, o:o + t_chunk, :],
                        preferred_element_type=jnp.float32)
            acc = p if acc is None else acc + p
        out_ref[0] = acc.astype(out_ref.dtype)

    @pl.when(jnp.logical_not(active))
    def _():
        # Must still write the full block: the VMEM output buffer may hold
        # stale data from a previous grid step and is DMA'd out regardless.
        out_ref[0] = jnp.zeros((tile_l, h_pad), out_ref.dtype)


def length_regulator(x, duration, max_len, *, tile_l=256, t_chunk=256):
    """x: [B, T, H] float; duration: [B, T] int/float; max_len: static int.

    Returns (output [B, max_len, H], mel_len [B] int32)."""
    B, T, H = x.shape
    # torch expand(max(int(d), 0), -1): truncate toward zero, clamp at zero.
    # (Matches the PyTorch reference's int(d) if un-rounded floats arrive.)
    dur = jnp.maximum(duration.astype(jnp.int32), 0)
    mel_len = jnp.sum(dur, axis=1, dtype=jnp.int32)      # pre-pad expanded len

    # TODO(synk): max_len=None (use max(mel_len)) needs a dynamic output
    # shape; this implementation requires a static max_len.

    # Lane-dense output: pad H to a multiple of 128 (unmasked vst).  This is a
    # no-op for typical FastSpeech2 hidden sizes (256/384/512).
    H_pad = _round_up(H, 128)
    x_k = x if H_pad == H else jnp.pad(x, ((0, 0), (0, 0), (0, H_pad - H)))

    # Contraction (T) chunking: bounds the live (TILE_L, Tc) mask working set.
    # Chunk size is a multiple of 128 so in-kernel lane slices stay aligned.
    if T > t_chunk:
        tc = _round_up(t_chunk, 128)
        T_pad = _round_up(T, tc)
    else:
        tc = T
        T_pad = T
    if T_pad != T:
        dur_p = jnp.pad(dur, ((0, 0), (0, T_pad - T)))    # padded dur == 0
        x_k = jnp.pad(x_k, ((0, 0), (0, T_pad - T), (0, 0)))
    else:
        dur_p = dur
    csum_excl = jnp.cumsum(dur_p, axis=1, dtype=jnp.int32) - dur_p

    # Length-tile size: multiple of the dtype-native sublane count
    # (8 for f32, 16 for bf16, 32 for int8/fp8) to avoid relayouts.
    itemsize = jnp.dtype(x.dtype).itemsize
    sub = max(8, 32 // itemsize)
    TILE_L = min(_round_up(max_len, sub), _round_up(tile_l, sub))
    n_l = -(-max_len // TILE_L)
    # Megacore-friendly grid: split the (usually large) length-tile axis
    # across a leading size-2 "parallel" axis so both v7x TensorCores stay
    # busy even at batch size 1-2.  Neutral on v5e/v6e.
    n_split = 2 if n_l >= 2 else 1
    n_l = _round_up(n_l, n_split)
    n_l_per = n_l // n_split
    L_pad = n_l * TILE_L

    excl_k = csum_excl.reshape(B, 1, T_pad)
    dur_k = dur_p.reshape(B, 1, T_pad)

    bytes_el = itemsize
    cost = pl.CostEstimate(
        flops=2 * B * L_pad * T_pad * H_pad,
        transcendentals=0,
        bytes_accessed=(B * T_pad * H_pad * bytes_el      # x
                        + B * L_pad * H_pad * bytes_el    # out
                        + 2 * B * T_pad * 4               # excl / dur rows
                        + B * 4),                         # mel_len
    )

    # Per-step VMEM estimate (double-buffered in/out blocks + mask/acc
    # scratch).  Raise the scoped limit above the v5e 16 MiB default only
    # when needed; cap at the v7x 64 MiB physical VMEM.
    est = (2 * T_pad * H_pad * bytes_el            # x (double buffered)
           + 2 * TILE_L * H_pad * bytes_el         # out tile (double buffered)
           + 2 * 2 * T_pad * 4                     # excl/dur rows
           + TILE_L * H_pad * 4                    # f32 accumulator
           + 3 * TILE_L * tc * 4)                  # mask intermediates
    vmem_limit = int(min(2 * est, 64 << 20)) if est > (14 << 20) else None

    kernel = functools.partial(_lr_kernel, t_chunk=tc)

    out = pl.pallas_call(
        kernel,
        out_shape=jax.ShapeDtypeStruct((B, L_pad, H_pad), x.dtype),
        grid_spec=pltpu.PrefetchScalarGridSpec(
            num_scalar_prefetch=1,        # mel_len -> SMEM, used for tile-skip
            grid=(n_split, B, n_l_per),
            in_specs=[
                pl.BlockSpec((1, 1, T_pad), lambda c, b, l, ml: (b, 0, 0)),
                pl.BlockSpec((1, 1, T_pad), lambda c, b, l, ml: (b, 0, 0)),
                # x stays resident across the inner (length-tile) axis.
                # (Could use pipeline_mode=pl.Buffered(1) to halve its VMEM
                # footprint since its block index is constant over that axis.)
                pl.BlockSpec((1, T_pad, H_pad), lambda c, b, l, ml: (b, 0, 0)),
            ],
            # If profiling shows exposed output-writeback DMA, bump this to
            # pipeline_mode=pl.Buffered(3); kept at default for portability.
            out_specs=pl.BlockSpec(
                (1, TILE_L, H_pad),
                lambda c, b, l, ml: (b, c * n_l_per + l, 0)),
        ),
        compiler_params=pltpu.CompilerParams(
            dimension_semantics=("parallel", "parallel", "parallel"),
            vmem_limit_bytes=vmem_limit),
        cost_estimate=cost,
    )(mel_len, excl_k, dur_k, x_k)

    # Strip tile / lane padding back to the requested output shape.
    if L_pad != max_len or H_pad != H:
        out = out[:, :max_len, :H]
    return out, mel_len


def _reference(x, duration, max_len):
    """Pure-numpy reference mirroring the PyTorch LR + pad."""
    x = np.asarray(x)
    duration = np.asarray(duration)
    B, T, H = x.shape
    out = np.zeros((B, max_len, H), dtype=x.dtype)
    mel_len = np.zeros((B,), dtype=np.int32)
    for b in range(B):
        rows = []
        for i in range(T):
            d = max(int(duration[b, i]), 0)
            rows.append(np.repeat(x[b, i:i + 1, :], d, axis=0))
        expanded = np.concatenate(rows, axis=0) if rows else np.zeros((0, H), x.dtype)
        mel_len[b] = expanded.shape[0]
        n = min(expanded.shape[0], max_len)
        out[b, :n, :] = expanded[:n, :]
    return out, mel_len


if __name__ == "__main__":
    key = jax.random.PRNGKey(0)
    k1, k2, k3, k4 = jax.random.split(key, 4)

    # --- Case 1: small shapes, single T chunk, f32 --------------------------
    B, T, H = 2, 8, 32
    MAX_LEN = 24
    x = jax.random.normal(k1, (B, T, H), dtype=jnp.float32)
    duration = jax.random.randint(k2, (B, T), 0, 4, dtype=jnp.int32)

    out, mel_len = length_regulator(x, duration, MAX_LEN)
    out = jax.block_until_ready(out)
    mel_len = jax.block_until_ready(mel_len)
    ref_out, ref_len = _reference(x, duration, MAX_LEN)
    np.testing.assert_allclose(np.asarray(out), ref_out, rtol=1e-5, atol=1e-5)
    np.testing.assert_array_equal(np.asarray(mel_len), ref_len)

    # --- Case 2: bf16 activations (one-hot selection must stay exact) -------
    xb = x.astype(jnp.bfloat16)
    out_b, _ = length_regulator(xb, duration, MAX_LEN)
    out_b = jax.block_until_ready(out_b)
    ref_b, _ = _reference(np.asarray(xb.astype(jnp.float32)), duration, MAX_LEN)
    np.testing.assert_array_equal(np.asarray(out_b.astype(jnp.float32)), ref_b)

    # --- Case 3: T-chunking, H padding, tile-skip, megacore length split ----
    B2, T2, H2 = 2, 256, 48
    MAX_LEN2 = 192
    x2 = jax.random.normal(k3, (B2, T2, H2), dtype=jnp.float32)
    duration2 = jax.random.randint(k4, (B2, T2), 0, 2, dtype=jnp.int32)
    out2, mel_len2 = length_regulator(x2, duration2, MAX_LEN2,
                                      tile_l=16, t_chunk=128)
    out2 = jax.block_until_ready(out2)
    ref_out2, ref_len2 = _reference(x2, duration2, MAX_LEN2)
    np.testing.assert_allclose(np.asarray(out2), ref_out2, rtol=1e-5, atol=1e-5)
    np.testing.assert_array_equal(np.asarray(mel_len2), ref_len2)

    print("KERNEL_OK")
</pallas_src>

<mosaic_0001>
module attributes {stable_mosaic.version = 11 : i64} {
  func.func @_lr_kernel(%arg0: i32, %arg1: i32, %arg2: i32, %arg3: memref<2xi32, #tpu.memory_space<smem>>, %arg4: memref<1x1x8xi32, #tpu.memory_space<vmem>>, %arg5: memref<1x1x8xi32, #tpu.memory_space<vmem>>, %arg6: memref<1x8x128xf32, #tpu.memory_space<vmem>>, %arg7: memref<1x24x128xf32, #tpu.memory_space<vmem>>) attributes {dimension_semantics = [#tpu.dimension_semantics<parallel>, #tpu.dimension_semantics<parallel>, #tpu.dimension_semantics<parallel>], iteration_bounds = array<i64: 1, 2, 1>, scalar_prefetch = 1 : i64, scratch_operands = 0 : i64, tpu.core_type = #tpu.core_type<tc>, window_params = [{transform_indices = @transform_0, window_bounds = array<i64: 1, 1, 8>}, {transform_indices = @transform_1, window_bounds = array<i64: 1, 1, 8>}, {transform_indices = @transform_2, window_bounds = array<i64: 1, 8, 128>}, {transform_indices = @transform_3, window_bounds = array<i64: 1, 24, 128>}]} {
    %c1_i32 = arith.constant 1 : i32
    %0 = arith.muli %arg0, %c1_i32 : i32
    %1 = arith.addi %0, %arg2 : i32
    %c24_i32 = arith.constant 24 : i32
    %2 = arith.muli %1, %c24_i32 : i32
    %3 = arith.index_cast %arg1 : i32 to index
    %4 = memref.load %arg3[%3] : memref<2xi32, #tpu.memory_space<smem>>
    %5 = arith.cmpi slt, %2, %4 : i32
    %6 = arith.extui %5 : i1 to i32
    %c0_i32 = arith.constant 0 : i32
    %7 = arith.cmpi ne, %6, %c0_i32 : i32
    scf.if %7 {
      %11 = tpu.iota {dimensions = array<i32: 0>} : vector<24x8xi32>
      %12 = vector.broadcast %2 : i32 to vector<24x8xi32>
      %13 = arith.addi %12, %11 : vector<24x8xi32>
      %c0 = arith.constant 0 : index
      %c0_1 = arith.constant 0 : index
      %c0_2 = arith.constant 0 : index
      %14 = vector.load %arg4[%c0, %c0_1, %c0_2] : memref<1x1x8xi32, #tpu.memory_space<vmem>>, vector<1x1x8xi32>
      %15 = vector.shape_cast %14 : vector<1x1x8xi32> to vector<1x8xi32>
      %c0_3 = arith.constant 0 : index
      %c0_4 = arith.constant 0 : index
      %c0_5 = arith.constant 0 : index
      %16 = vector.load %arg5[%c0_3, %c0_4, %c0_5] : memref<1x1x8xi32, #tpu.memory_space<vmem>>, vector<1x1x8xi32>
      %17 = vector.shape_cast %16 : vector<1x1x8xi32> to vector<1x8xi32>
      %18 = vector.broadcast %15 : vector<1x8xi32> to vector<24x8xi32>
      %19 = arith.subi %13, %18 : vector<24x8xi32>
      %20 = vector.broadcast %17 : vector<1x8xi32> to vector<24x8xi32>
      %21 = arith.cmpi ult, %19, %20 : vector<24x8xi32>
      %22 = arith.extui %21 : vector<24x8xi1> to vector<24x8xi32>
      %23 = arith.sitofp %22 : vector<24x8xi32> to vector<24x8xf32>
      %c0_6 = arith.constant 0 : index
      %c0_7 = arith.constant 0 : index
      %c0_8 = arith.constant 0 : index
      %24 = vector.load %arg6[%c0_6, %c0_7, %c0_8] : memref<1x8x128xf32, #tpu.memory_space<vmem>>, vector<1x8x128xf32>
      %25 = vector.shape_cast %24 : vector<1x8x128xf32> to vector<8x128xf32>
      %cst = arith.constant dense<0.000000e+00> : vector<24x128xf32>
      %26 = tpu.matmul %23, %25, %cst {dimension_numbers = #tpu.dot_dimension_numbers<[1], [0], [0], [1], [0, 0, 1, 1], [], []>} : vector<24x8xf32>, vector<8x128xf32>, vector<24x128xf32> -> vector<24x128xf32>
      %c0_9 = arith.constant 0 : index
      %c0_10 = arith.constant 0 : index
      %c0_11 = arith.constant 0 : index
      %27 = vector.load %arg7[%c0_9, %c0_10, %c0_11] : memref<1x24x128xf32, #tpu.memory_space<vmem>>, vector<1x24x128xf32>
      %28 = vector.shape_cast %27 : vector<1x24x128xf32> to vector<24x128xf32>
      %29 = vector.shape_cast %26 : vector<24x128xf32> to vector<1x24x128xf32>
      tpu.vector_store %arg7[%c0_9, %c0_10, %c0_11], %29 {strides = array<i32>} : memref<1x24x128xf32, #tpu.memory_space<vmem>>, vector<1x24x128xf32>,
    } else {
    }
    %true = arith.constant true
    %8 = arith.xori %5, %true : i1
    %9 = arith.extui %8 : i1 to i32
    %c0_i32_0 = arith.constant 0 : i32
    %10 = arith.cmpi ne, %9, %c0_i32_0 : i32
    scf.if %10 {
      %cst = arith.constant 0.000000e+00 : f32
      %11 = vector.broadcast %cst : f32 to vector<24x128xf32>
      %c0 = arith.constant 0 : index
      %c0_1 = arith.constant 0 : index
      %c0_2 = arith.constant 0 : index
      %12 = vector.load %arg7[%c0, %c0_1, %c0_2] : memref<1x24x128xf32, #tpu.memory_space<vmem>>, vector<1x24x128xf32>
      %13 = vector.shape_cast %12 : vector<1x24x128xf32> to vector<24x128xf32>
      %14 = vector.shape_cast %11 : vector<24x128xf32> to vector<1x24x128xf32>
      tpu.vector_store %arg7[%c0, %c0_1, %c0_2], %14 {strides = array<i32>} : memref<1x24x128xf32, #tpu.memory_space<vmem>>, vector<1x24x128xf32>,
    } else {
    }
    return
  }
  func.func @transform_0(%arg0: i32, %arg1: i32, %arg2: i32, %arg3: memref<2xi32, #tpu.memory_space<smem>>) -> (i32, i32, i32) {
    %c0_i32 = arith.constant 0 : i32
    %c0_i32_0 = arith.constant 0 : i32
    %c0_i32_1 = arith.constant 0 : i32
    return %arg1, %c0_i32, %c0_i32_0 : i32, i32, i32
  }
  func.func @transform_1(%arg0: i32, %arg1: i32, %arg2: i32, %arg3: memref<2xi32, #tpu.memory_space<smem>>) -> (i32, i32, i32) {
    %c0_i32 = arith.constant 0 : i32
    %c0_i32_0 = arith.constant 0 : i32
    %c0_i32_1 = arith.constant 0 : i32
    return %arg1, %c0_i32, %c0_i32_0 : i32, i32, i32
  }
  func.func @transform_2(%arg0: i32, %arg1: i32, %arg2: i32, %arg3: memref<2xi32, #tpu.memory_space<smem>>) -> (i32, i32, i32) {
    %c0_i32 = arith.constant 0 : i32
    %c0_i32_0 = arith.constant 0 : i32
    %c0_i32_1 = arith.constant 0 : i32
    return %arg1, %c0_i32, %c0_i32_0 : i32, i32, i32
  }
  func.func @transform_3(%arg0: i32, %arg1: i32, %arg2: i32, %arg3: memref<2xi32, #tpu.memory_space<smem>>) -> (i32, i32, i32) {
    %c1_i32 = arith.constant 1 : i32
    %0 = arith.muli %arg0, %c1_i32 : i32
    %1 = arith.addi %0, %arg2 : i32
    %c0_i32 = arith.constant 0 : i32
    %c0_i32_0 = arith.constant 0 : i32
    return %arg1, %1, %c0_i32 : i32, i32, i32
  }
}

</mosaic_0001>

<llo_original>
// kernel: tpu_custom_call.1
$region0: #{tpu_custom_call.1}
  #allocation0 [shape = 'u32[]', space=smem, size = 0x4, offset = 0x4, fixed_abs, tag = 'smem constant byte address 0x4 - core index']
  #allocation1 [shape = 'u32[72,128]{1,0:T(1,128)}', space=vmem, size = 0x9000, scoped, tag = 'internal scratch']
  #allocation2 [shape = 's32[1]{0}', space=sflag, size = 0x4, scoped, tag = 'scoped memory for tpu_custom_call.1']
  #allocation3 [shape = 'u8[512]{0}', space=smem, size = 0x200, scoped, tag = 'prefetched SMEM operand 0']
  %s0 = inlined_call_operand.hbm [shape: s32[2], index: 0, kind: input, shape index: {}]
  %s1 = inlined_call_operand.hbm [shape: s32[2,1,8], index: 1, kind: input, shape index: {}]
  %s2 = inlined_call_operand.hbm [shape: s32[2,1,8], index: 2, kind: input, shape index: {}]
  %s3 = inlined_call_operand.hbm [shape: f32[2,8,128], index: 3, kind: input, shape index: {}]
  %s4 = inlined_call_operand.hbm [shape: f32[2,24,128], index: 4, kind: output, shape index: {}]
  %s5 = sld [smem:[#allocation0]]
  $region65: #{tpu_custom_call.1} parent=0
    _
  %s7 = ssub.s32 1, %s5
  %s8 = scalar_select 0, %s7, %s5
  %s10 = sshll.u32 %s0, 4
  %s11 = int_to_ptr.hbm [resolvable:$true] %s10
  %13 = dma.hbm_to_smem %s11, 16, [#allocation3], [#allocation2]
  %15 = dma.done [#allocation2], 16
  %16 = sfence
  $region1: #{tpu_custom_call.1} parent=0
    #allocation4 [shape = 'u8[1024]{0}', space=vmem, size = 0x400, scoped, tag = 'input window, operand 1']
    #allocation5 [shape = 's32[2]{0}', space=sflag, size = 0x8, scoped, tag = 'scoped memory for tpu_custom_call.1']
    #allocation6 [shape = 's32[2]{0}', space=sflag, size = 0x8, scoped, tag = 'scoped memory for tpu_custom_call.1']
    #allocation7 [shape = 'u8[1024]{0}', space=vmem, size = 0x400, scoped, tag = 'input window, operand 2']
    #allocation8 [shape = 's32[2]{0}', space=sflag, size = 0x8, scoped, tag = 'scoped memory for tpu_custom_call.1']
    #allocation9 [shape = 'u8[8192]{0}', space=vmem, size = 0x2000, scoped, tag = 'input window, operand 3']
    #allocation10 [shape = 'u8[24576]{0}', space=vmem, size = 0x6000, scoped, tag = 'output window, operand 0']
    %17 = vsyncpa [#allocation5], 0
    %s18 = scalar_lea.sflag [#allocation5], 1
    %19 = vsyncpa %s18, 0
    %20 = vsyncpa [#allocation8], 0
    %s21 = scalar_lea.sflag [#allocation8], 1
    %22 = vsyncpa %s21, 0
    %23 = vsyncpa [#allocation6], 0
    %s24 = scalar_lea.sflag [#allocation6], 1
    %25 = vsyncpa %s24, 0
    loop: start=0, step=1, limit=4
    $region2: #{tpu_custom_call.1} parent=1 // loop_pre_header
      _
    $region3: #{tpu_custom_call.1} parent=1 // loop_header
      %s27 = sphi 0, %s31
      %p28 = scmp.ge.s32.totalorder %s27, 4
      %s34 = sphi 0, %s53
      %s35 = sphi 0, %s49
      %s36 = sphi 0, %s45
      %s37 = sphi 0, %s34
      %s38 = sphi 0, %s35
      %s39 = sphi 0, %s36
      %s40 = sphi 0, %s37
      %s41 = sphi 0, %s38
      %s42 = sphi 0, %s39
      %s56 = sphi 0, %s58
      %s59 = sphi 0, %s56
      %s60 = sphi 0, %s59
      %s76 = sphi 0, %s60
      %s82 = sphi 0, %s84
      %s85 = sphi 0, %s82
      %s86 = sphi 0, %s85
      %s102 = sphi 0, %s86
      %s108 = sphi 0, %s110
      %s111 = sphi 0, %s108
      %s112 = sphi 0, %s111
      %s128 = sphi 0, %s112
      %s138 = sphi 0, %s140
      %s141 = sphi 0, %s138
      %s142 = sphi 0, %s141
      %s158 = sphi 0, %s142
    $region4: #{tpu_custom_call.1} parent=1 // loop_header_branch
      %30 = sbr.rel (%p28) target = $region8
    $region5: #{tpu_custom_call.1} parent=1 // loop_body
      %s32 = ssub.s32 %s27, 1
      %s33 = ssub.s32 %s27, 2
      %s43 = sadd.s32 1, %s36
      %p44 = scmp.ge.s32.totalorder %s43, 1
      %s45 = scalar_select %p44, 0, %s43
      %s46 = sadd.s32 1, %s35
      %s47 = scalar_select %p44, %s46, %s35
      %p48 = scmp.ge.s32.totalorder %s47, 2
      %s49 = scalar_select %p48, 0, %s47
      %s50 = sadd.s32 1, %s34
      %s51 = scalar_select %p48, %s50, %s34
      %p52 = scmp.ge.s32.totalorder %s51, 1
      %s53 = scalar_select %p52, 0, %s51
      %s54 = ssub.s32 %s35, %s49
      %p55 = scmp.eq.s32.totalorder %s54, 0
      %s57 = sadd.s32 %s56, 1
      %s58 = scalar_select %p55, %s56, %s57
      %p61 = pneg %p55
      %p62 = scmp.eq.s32.totalorder %s27, 1
      %p63 = por %p61, %p62
      %p64 = scmp.ne.s32.totalorder %s56, %s59
      %p65 = scmp.eq.s32.totalorder %s27, 0
      %p66 = por %p64, %p65
      %p67 = scmp.ne.s32.totalorder %s56, %s59
      %p68 = scmp.eq.s32.totalorder %s32, 1
      %p69 = por %p67, %p68
      %p70 = scmp.ne.s32.totalorder %s59, %s60
      %p71 = scmp.eq.s32.totalorder %s32, 0
      %p72 = por %p70, %p71
      %p73 = scmp.ne.s32.totalorder %s59, %s60
      %p74 = scmp.eq.s32.totalorder %s33, 1
      %p75 = por %p73, %p74
      %p77 = scmp.ne.s32.totalorder %s60, %s76
      %p78 = scmp.eq.s32.totalorder %s33, 0
      %p79 = por %p77, %p78
      %s80 = ssub.s32 %s35, %s49
      %p81 = scmp.eq.s32.totalorder %s80, 0
      %s83 = sadd.s32 %s82, 1
      %s84 = scalar_select %p81, %s82, %s83
      %p87 = pneg %p81
      %p88 = scmp.eq.s32.totalorder %s27, 1
      %p89 = por %p87, %p88
      %p90 = scmp.ne.s32.totalorder %s82, %s85
      %p91 = scmp.eq.s32.totalorder %s27, 0
      %p92 = por %p90, %p91
      %p93 = scmp.ne.s32.totalorder %s82, %s85
      %p94 = scmp.eq.s32.totalorder %s32, 1
      %p95 = por %p93, %p94
      %p96 = scmp.ne.s32.totalorder %s85, %s86
      %p97 = scmp.eq.s32.totalorder %s32, 0
      %p98 = por %p96, %p97
      %p99 = scmp.ne.s32.totalorder %s85, %s86
      %p100 = scmp.eq.s32.totalorder %s33, 1
      %p101 = por %p99, %p100
      %p103 = scmp.ne.s32.totalorder %s86, %s102
      %p104 = scmp.eq.s32.totalorder %s33, 0
      %p105 = por %p103, %p104
      %s106 = ssub.s32 %s35, %s49
      %p107 = scmp.eq.s32.totalorder %s106, 0
      %s109 = sadd.s32 %s108, 1
      %s110 = scalar_select %p107, %s108, %s109
      %p113 = pneg %p107
      %p114 = scmp.eq.s32.totalorder %s27, 1
      %p115 = por %p113, %p114
      %p116 = scmp.ne.s32.totalorder %s108, %s111
      %p117 = scmp.eq.s32.totalorder %s27, 0
      %p118 = por %p116, %p117
      %p119 = scmp.ne.s32.totalorder %s108, %s111
      %p120 = scmp.eq.s32.totalorder %s32, 1
      %p121 = por %p119, %p120
      %p122 = scmp.ne.s32.totalorder %s111, %s112
      %p123 = scmp.eq.s32.totalorder %s32, 0
      %p124 = por %p122, %p123
      %p125 = scmp.ne.s32.totalorder %s111, %s112
      %p126 = scmp.eq.s32.totalorder %s33, 1
      %p127 = por %p125, %p126
      %p129 = scmp.ne.s32.totalorder %s112, %s128
      %p130 = scmp.eq.s32.totalorder %s33, 0
      %p131 = por %p129, %p130
      %s132 = sadd.s32 %s34, %s36
      %s133 = sadd.s32 %s53, %s45
      %s134 = ssub.s32 %s35, %s49
      %s135 = ssub.s32 %s132, %s133
      %s136 = sor.u32 %s134, %s135
      %p137 = scmp.eq.s32.totalorder %s136, 0
      %s139 = sadd.s32 %s138, 1
      %s140 = scalar_select %p137, %s138, %s139
      %p143 = pneg %p137
      %p144 = scmp.eq.s32.totalorder %s27, 1
      %p145 = por %p143, %p144
      %p146 = scmp.ne.s32.totalorder %s138, %s141
      %p147 = scmp.eq.s32.totalorder %s27, 0
      %p148 = por %p146, %p147
      %p149 = scmp.ne.s32.totalorder %s138, %s141
      %p150 = scmp.eq.s32.totalorder %s32, 1
      %p151 = por %p149, %p150
      %p152 = scmp.ne.s32.totalorder %s141, %s142
      %p153 = scmp.eq.s32.totalorder %s32, 0
      %p154 = por %p152, %p153
      %p155 = scmp.ne.s32.totalorder %s141, %s142
      %p156 = scmp.eq.s32.totalorder %s33, 1
      %p157 = por %p155, %p156
      %p159 = scmp.ne.s32.totalorder %s142, %s158
      %p160 = scmp.eq.s32.totalorder %s33, 0
      %p161 = por %p159, %p160
      %p162 = scmp.le.s32.totalorder 1, %s27
      %p163 = scmp.lt.s32.totalorder %s27, 3
      %p164 = pnand %p162, %p163
      %p165 = pneg %p164
      // Predicated region
      $region9: #{tpu_custom_call.1} parent=5 // pred_check
        _
      $region10: #{tpu_custom_call.1} parent=5 // pred_check_branch
        %167 = sbr.rel (%p164) target = $region12
      $region11: #{tpu_custom_call.1} parent=5 // pred_region
        %s168 = ssub.s32 %s27, 1
      $region12: #{tpu_custom_call.1} parent=5 // pred_fallthru
        _
      %p169 = scmp.lt.s32.totalorder %s27, 2
      // Predicated region
      $region13: #{tpu_custom_call.1} parent=5 // pred_check
        %p170 = pneg %p169
      $region14: #{tpu_custom_call.1} parent=5 // pred_check_branch
        %172 = sbr.rel (%p170) target = $region16
      $region15: #{tpu_custom_call.1} parent=5 // pred_region
        // Predicated region
        $region17: #{tpu_custom_call.1} parent=15 // pred_check
          %p173 = pneg %p66
        $region18: #{tpu_custom_call.1} parent=15 // pred_check_branch
          %175 = sbr.rel (%p173) target = $region20
        $region19: #{tpu_custom_call.1} parent=15 // pred_region
          %s176 = sand.u32 %s56, 1
          %s177 = scalar_lea.sflag [#allocation5], %s176
          %s178 = sand.u32 %s56, 1
          %s179 = scalar_lea.vmem [#allocation4], %s178
          %181 = vsyncadd %s177, 0
          %s182 = scalar_lea.hbm %s1, %s35
          %s184 = sshll.u32 %s182, 4
          %s185 = int_to_ptr.hbm [resolvable:$true] %s184
          %s186 = sshll.u32 %s179, 4
          %s187 = int_to_ptr.vmem [resolvable:$true] %s186
          %189 = dma.hbm_to_vmem [thread:$0]  %s185, 16, %s187, %s177
        $region20: #{tpu_custom_call.1} parent=15 // pred_fallthru
          _
        // Predicated region
        $region21: #{tpu_custom_call.1} parent=15 // pred_check
          %p190 = pneg %p92
        $region22: #{tpu_custom_call.1} parent=15 // pred_check_branch
          %192 = sbr.rel (%p190) target = $region24
        $region23: #{tpu_custom_call.1} parent=15 // pred_region
          %s193 = sand.u32 %s27, 1
          %s194 = scalar_lea.sflag [#allocation8], %s193
          %s195 = sand.u32 %s82, 1
          %s196 = scalar_lea.vmem [#allocation7], %s195
          %198 = vsyncadd %s194, 0
          %s199 = scalar_lea.hbm %s2, %s35
          %s201 = sshll.u32 %s199, 4
          %s202 = int_to_ptr.hbm [resolvable:$true] %s201
          %s203 = sshll.u32 %s196, 4
          %s204 = int_to_ptr.vmem [resolvable:$true] %s203
          %206 = dma.hbm_to_vmem [thread:$0]  %s202, 16, %s204, %s194
        $region24: #{tpu_custom_call.1} parent=15 // pred_fallthru
          _
        // Predicated region
        $region25: #{tpu_custom_call.1} parent=15 // pred_check
          %p207 = pneg %p118
        $region26: #{tpu_custom_call.1} parent=15 // pred_check_branch
          %209 = sbr.rel (%p207) target = $region28
        $region27: #{tpu_custom_call.1} parent=15 // pred_region
          %s210 = sand.u32 %s27, 1
          %s211 = scalar_lea.sflag [#allocation8], %s210
          %s212 = sand.u32 %s108, 1
          %s213 = smul.addr %s212, 8
          %s214 = scalar_lea.vmem [#allocation9], %s213
          %216 = vsyncadd %s211, 0
          %s217 = smul.addr %s35, 8
          %s218 = scalar_lea.hbm %s3, %s217
          %s220 = sshll.u32 %s218, 4
          %s221 = int_to_ptr.hbm [resolvable:$true] %s220
          %s222 = sshll.u32 %s214, 4
          %s223 = int_to_ptr.vmem [resolvable:$true] %s222
          %225 = dma.hbm_to_vmem [thread:$0]  %s221, 128, %s223, %s211
        $region28: #{tpu_custom_call.1} parent=15 // pred_fallthru
          _
      $region16: #{tpu_custom_call.1} parent=5 // pred_fallthru
        _
      %p226 = scmp.le.s32.totalorder 1, %s27
      %p227 = scmp.lt.s32.totalorder %s27, 3
      %p228 = pnand %p226, %p227
      %p229 = pneg %p228
      // Predicated region
      $region29: #{tpu_custom_call.1} parent=5 // pred_check
        _
      $region30: #{tpu_custom_call.1} parent=5 // pred_check_branch
        %231 = sbr.rel (%p228) target = $region32
      $region31: #{tpu_custom_call.1} parent=5 // pred_region
        %s232 = ssub.s32 %s27, 1
        %s233 = sand.u32 %s59, 1
        %s234 = scalar_lea.sflag [#allocation5], %s233
        %s235 = sand.u32 %s59, 1
        %s236 = scalar_lea.vmem [#allocation4], %s235
        // Predicated region
        $region33: #{tpu_custom_call.1} parent=31 // pred_check
          %p237 = pneg %p72
        $region34: #{tpu_custom_call.1} parent=31 // pred_check_branch
          %239 = sbr.rel (%p237) target = $region36
        $region35: #{tpu_custom_call.1} parent=31 // pred_region
          %241 = dma.done %s234, 16
        $region36: #{tpu_custom_call.1} parent=31 // pred_fallthru
          _
        %s242 = sand.u32 %s32, 1
        %s243 = scalar_lea.sflag [#allocation8], %s242
        %s244 = sand.u32 %s85, 1
        %s245 = scalar_lea.vmem [#allocation7], %s244
        // Predicated region
        $region37: #{tpu_custom_call.1} parent=31 // pred_check
          %p246 = pneg %p98
        $region38: #{tpu_custom_call.1} parent=31 // pred_check_branch
          %248 = sbr.rel (%p246) target = $region40
        $region39: #{tpu_custom_call.1} parent=31 // pred_region
          %250 = dma.done %s243, 16
        $region40: #{tpu_custom_call.1} parent=31 // pred_fallthru
          _
        %s251 = sand.u32 %s32, 1
        %s252 = scalar_lea.sflag [#allocation8], %s251
        %s253 = sand.u32 %s111, 1
        %s254 = smul.addr %s253, 8
        %s255 = scalar_lea.vmem [#allocation9], %s254
        // Predicated region
        $region41: #{tpu_custom_call.1} parent=31 // pred_check
          %p256 = pneg %p124
        $region42: #{tpu_custom_call.1} parent=31 // pred_check_branch
          %258 = sbr.rel (%p256) target = $region44
        $region43: #{tpu_custom_call.1} parent=31 // pred_region
          %260 = dma.done %s252, 128
        $region44: #{tpu_custom_call.1} parent=31 // pred_fallthru
          _
        %s261 = sand.u32 %s59, 1
        %s262 = scalar_lea.sflag [#allocation5], %s261
        %s263 = sand.u32 %s59, 1
        %s264 = scalar_lea.vmem [#allocation4], %s263
        %p265 = pneg %p72
        %p266 = pneg %p69
        %s267 = sand.u32 %s32, 1
        %s268 = scalar_lea.sflag [#allocation8], %s267
        %s269 = sand.u32 %s85, 1
        %s270 = scalar_lea.vmem [#allocation7], %s269
        %p271 = pneg %p98
        %p272 = pneg %p95
        %s273 = sand.u32 %s32, 1
        %s274 = scalar_lea.sflag [#allocation8], %s273
        %s275 = sand.u32 %s111, 1
        %s276 = smul.addr %s275, 8
        %s277 = scalar_lea.vmem [#allocation9], %s276
        %p278 = pneg %p124
        %p279 = pneg %p121
        %p280 = pneg %p154
        %p281 = pneg %p151
        %s282 = sand.u32 %s141, 1
        %s283 = scalar_lea.sflag [#allocation6], %s282
        %s284 = sand.u32 %s141, 1
        %s285 = smul.addr %s284, 24
        %s286 = scalar_lea.vmem [#allocation10], %s285
        %s287 = sadd.s32 %s37, %s39
        %s288 = smul.u32 3, %s287
        %s289 = sadd.s32 %s37, %s39
        %s290 = smul.u32 %s289, 24
        %s291 = sld [smem:[#allocation3 + %s38]]
        %p292 = scmp.lt.s32.totalorder %s290, %s291
        // Predicated region
        $region45: #{tpu_custom_call.1} parent=31 // pred_check
          %p293 = pneg %p292
        $region46: #{tpu_custom_call.1} parent=31 // pred_check_branch
          %295 = sbr.rel (%p293) target = $region48
        $region47: #{tpu_custom_call.1} parent=31 // pred_region
          %v296 = vlaneseq
          %v297 = vshrl.u32 %v296, 7
          %v298 = vadd.s32 %v297, 8
          %v299 = vadd.s32 %v297, 16
          %v300 = vstv %s290
          %v301 = vadd.s32 %v300, %v297
          %v302 = vadd.s32 %v300, %v298
          %v303 = vadd.s32 %v300, %v299
          %v304 = vld [vmem:[%s236] sm:$0x1]
          %v305 = vld [vmem:[%s245] sm:$0x1]
          %v306 = vperm.slane %v304, 0
          %v307 = vsub.s32 %v301, %v306
          %v308 = vsub.s32 %v302, %v306
          %v309 = vsub.s32 %v303, %v306
          %v310 = vperm.slane %v305, 0
          %v311 = vadd.s32 %v307, 2147483648
          %v312 = vadd.s32 %v310, 2147483648
          %vm313 = vcmp.lt.s32.totalorder %v311, %v312
          %v314 = vadd.s32 %v308, 2147483648
          %v315 = vadd.s32 %v310, 2147483648
          %vm316 = vcmp.lt.s32.totalorder %v314, %v315
          %v317 = vadd.s32 %v309, 2147483648
          %v318 = vadd.s32 %v310, 2147483648
          %vm319 = vcmp.lt.s32.totalorder %v317, %v318
          %v320 = vsel %vm313, 1, 0
          %v321 = vsel %vm316, 1, 0
          %v322 = vsel %vm319, 1, 0
          %v323 = vcvt.s32.f32 %v320
          %v324 = vcvt.s32.f32 %v321
          %v325 = vcvt.s32.f32 %v322
          %v326 = vld [vmem:[%s255] sm:$0xff]
          %vm327 = vcmask 64512
          %v329 = vsel %vm327, %v323, 0
          %v332 = vsel %vm327, %v324, 0
          %v335 = vsel %vm327, %v325, 0
          %337 = vmatpush.msra.mxu0 0.0
          %338 = vmatpush.msra.mxu0 0.0
          %339 = vmatpush.msra.mxu0 0.0
          %340 = vmatpush.msra.mxu0 0.0
          %341 = vmatpush.msra.mxu0 0.0
          %342 = vmatpush.msra.mxu0 0.0
          %343 = vmatpush.msra.mxu0 0.0
          %344 = vmatpush.msra.mxu0 0.0
          %345 = vmatpush.msra.mxu0 0.0
          %346 = vmatpush.msra.mxu0 0.0
          %347 = vmatpush.msra.mxu0 0.0
          %348 = vmatpush.msra.mxu0 0.0
          %349 = vmatpush.msra.mxu0 0.0
          %350 = vmatpush.msra.mxu0 0.0
          %351 = vmatpush.msra.mxu0 0.0
          %352 = vmatpush.msra.mxu0 %v326
          %353 = vmatmul.f32.gmra.mxu0 %v329
          %v354 = vpop.f32.mrf.mxu0
          %v355 = vadd.f32 0.0, %v354
          %356 = vmatmul.f32.gmra.mxu0 %v332
          %v357 = vpop.f32.mrf.mxu0
          %v358 = vadd.f32 0.0, %v357
          %359 = vmatmul.f32.gmra.mxu0 %v335
          %v360 = vpop.f32.mrf.mxu0
          %v361 = vadd.f32 0.0, %v360
          %362 = vdwg.mxu0
          %363 = vst [vmem:[%s286] sm:$0xff] %v355
          %364 = vst [vmem:[%s286 + $0x8] sm:$0xff] %v358
          %365 = vst [vmem:[%s286 + $0x10] sm:$0xff] %v361
        $region48: #{tpu_custom_call.1} parent=31 // pred_fallthru
          _
        %p366 = scmp.ge.s32.totalorder %s290, %s291
        // Predicated region
        $region49: #{tpu_custom_call.1} parent=31 // pred_check
          %p367 = pneg %p366
        $region50: #{tpu_custom_call.1} parent=31 // pred_check_branch
          %369 = sbr.rel (%p367) target = $region52
        $region51: #{tpu_custom_call.1} parent=31 // pred_region
          %370 = vst [vmem:[%s286] sm:$0xff] 0.0
          %371 = vst [vmem:[%s286 + $0x8] sm:$0xff] 0.0
          %372 = vst [vmem:[%s286 + $0x10] sm:$0xff] 0.0
        $region52: #{tpu_custom_call.1} parent=31 // pred_fallthru
          _
        %s373 = sand.u32 %s141, 1
        %s374 = scalar_lea.sflag [#allocation6], %s373
        %s375 = sand.u32 %s141, 1
        %s376 = smul.addr %s375, 24
        %s377 = scalar_lea.vmem [#allocation10], %s376
        // Predicated region
        $region53: #{tpu_custom_call.1} parent=31 // pred_check
          %p378 = pneg %p151
        $region54: #{tpu_custom_call.1} parent=31 // pred_check_branch
          %380 = sbr.rel (%p378) target = $region56
        $region55: #{tpu_custom_call.1} parent=31 // pred_region
          %s381 = sadd.s32 %s37, %s39
          %s382 = smul.u32 3, %s381
          %384 = vsyncadd %s374, 0
          %s385 = smul.addr %s38, 3
          %s386 = sadd.s32 %s382, %s385
          %s387 = smul.addr %s386, 8
          %s388 = scalar_lea.hbm %s4, %s387
          %s389 = sshll.u32 %s377, 4
          %s390 = int_to_ptr.vmem [resolvable:$true] %s389
          %s391 = sshll.u32 %s388, 4
          %s392 = int_to_ptr.hbm [resolvable:$true] %s391
          %397 = dma.vmem_to_hbm [thread:$0]  %s390, 384, %s392, %s374, 128, 128, 8
        $region56: #{tpu_custom_call.1} parent=31 // pred_fallthru
          _
      $region32: #{tpu_custom_call.1} parent=5 // pred_fallthru
        _
      %p398 = scmp.le.s32.totalorder 2, %s27
      // Predicated region
      $region57: #{tpu_custom_call.1} parent=5 // pred_check
        %p399 = pneg %p398
      $region58: #{tpu_custom_call.1} parent=5 // pred_check_branch
        %401 = sbr.rel (%p399) target = $region60
      $region59: #{tpu_custom_call.1} parent=5 // pred_region
        %s402 = ssub.s32 %s27, 2
        // Predicated region
        $region61: #{tpu_custom_call.1} parent=59 // pred_check
          %p403 = pneg %p157
        $region62: #{tpu_custom_call.1} parent=59 // pred_check_branch
          %405 = sbr.rel (%p403) target = $region64
        $region63: #{tpu_custom_call.1} parent=59 // pred_region
          %s406 = sand.u32 %s142, 1
          %s407 = scalar_lea.sflag [#allocation6], %s406
          %s408 = sand.u32 %s142, 1
          %s409 = smul.addr %s408, 24
          %s410 = scalar_lea.vmem [#allocation10], %s409
          %412 = dma.done %s407, 384
        $region64: #{tpu_custom_call.1} parent=59 // pred_fallthru
          _
      $region60: #{tpu_custom_call.1} parent=5 // pred_fallthru
        _
    $region6: #{tpu_custom_call.1} parent=1 // loop_footer
      %s31 = sadd.s32 1, %s27
    $region7: #{tpu_custom_call.1} parent=1 // loop_footer_branch
      %26 = sbr.rel target = $region3
    $region8: #{tpu_custom_call.1} parent=1 // loop_exit
      _
    %413 = vsyncpa [#allocation5], 1
    %s414 = scalar_lea.sflag [#allocation5], 1
    %415 = vsyncpa %s414, 1
    %416 = vsyncpa [#allocation8], 1
    %s417 = scalar_lea.sflag [#allocation8], 1
    %418 = vsyncpa %s417, 1
    %419 = vsyncpa [#allocation6], 1
    %s420 = scalar_lea.sflag [#allocation6], 1
    %421 = vsyncpa %s420, 1

</llo_original>
